<compile_context>
chip_gen: v5e
topology: v5e:2x2
jax: 0.10.0
libtpu: 0.0.40
codegen_flags: <defaults>
</compile_context>

<pallas_src>
import functools
import math

import numpy as np

import jax
import jax.numpy as jnp
from jax.experimental import pallas as pl
from jax.experimental.pallas import tpu as pltpu


_SQRT2 = math.sqrt(2.0)
_TD = 8  # destination nodes handled per grid step in the fused edge kernel


def _row_tile(m, cap=2048):
    """Row-tile size: multiple of 8 sublanes, capped for VMEM (safe on v7x's
    64 MiB), and chosen so moderate row counts still produce >=2 grid steps
    (both v7x TensorCores only work when the 'parallel' axis has >=2 steps)."""
    if m <= 8:
        return m
    half = -(-m // 2)            # cdiv(m, 2)
    half = -(-half // 8) * 8     # round up to sublane multiple
    return min(cap, half)


# ----------------------------- Pallas kernels -------------------------------

def _linear_kernel(x_ref, w_ref, b_ref, o_ref, *, act):
    # bf16 MXU operands, f32 accumulation; bias + activation in f32.
    y = jnp.dot(x_ref[...].astype(jnp.bfloat16), w_ref[...],
                preferred_element_type=jnp.float32) + b_ref[...]
    if act == "relu":
        y = jnp.maximum(y, 0.0)
    o_ref[...] = y.astype(o_ref.dtype)


def linear(x, w, b, act=None):
    """y = act(x @ w + b).  x:[M,K] f32, w:[K,N] (cast bf16), b:[1,N] f32."""
    M, K = x.shape
    N = w.shape[1]
    tm = _row_tile(M)
    return pl.pallas_call(
        functools.partial(_linear_kernel, act=act),
        out_shape=jax.ShapeDtypeStruct((M, N), jnp.float32),
        grid=(pl.cdiv(M, tm),),
        in_specs=[pl.BlockSpec((tm, K), lambda i: (i, 0)),
                  pl.BlockSpec((K, N), lambda i: (0, 0)),
                  pl.BlockSpec((1, N), lambda i: (0, 0))],
        out_specs=pl.BlockSpec((tm, N), lambda i: (i, 0)),
        compiler_params=pltpu.CompilerParams(
            dimension_semantics=("parallel",)),
    )(x, w.astype(jnp.bfloat16), b)


def _proj_kernel(x_ref, w_ref, b_ref, *o_refs):
    # One fused projection per node type.  Each output segment (q plus the
    # relation-fused k'/v' of every outgoing edge type) is written to its own
    # output ref, so no unaligned column slicing ever hits HBM.
    x = x_ref[...].astype(jnp.bfloat16)
    for j, o_ref in enumerate(o_refs):
        o_ref[...] = (jnp.dot(x, w_ref[j], preferred_element_type=jnp.float32)
                      + b_ref[j])


def fused_projection(x, w_stack, b_stack):
    """x:[M,K] f32, w_stack:[n_out,K,HD] bf16, b_stack:[n_out,1,HD] f32
    -> tuple of n_out [M,HD] f32 arrays."""
    M, K = x.shape
    n_out, _, hd = w_stack.shape
    tm = _row_tile(M)
    out_shape = tuple(jax.ShapeDtypeStruct((M, hd), jnp.float32)
                      for _ in range(n_out))
    out_specs = tuple(pl.BlockSpec((tm, hd), lambda i: (i, 0))
                      for _ in range(n_out))
    return pl.pallas_call(
        _proj_kernel,
        out_shape=out_shape,
        grid=(pl.cdiv(M, tm),),
        in_specs=[pl.BlockSpec((tm, K), lambda i: (i, 0)),
                  pl.BlockSpec((n_out, K, hd), lambda i: (0, 0, 0)),
                  pl.BlockSpec((n_out, 1, hd), lambda i: (0, 0, 0))],
        out_specs=out_specs,
        compiler_params=pltpu.CompilerParams(
            dimension_semantics=("parallel",)),
    )(x, w_stack, b_stack)


def _edge_attn_kernel(qe_ref, ke_ref, ve_ref, dloc_ref, rmat_ref, o_ref, *, td):
    # Fused per-destination-tile attention: score -> exact segment softmax ->
    # alpha-weighted message -> scatter-add, all on-chip.  Scores live in the
    # lane-dense [E, H*D] layout (per-head score broadcast across that head's
    # D lanes); p_rel/sqrt(D) is already folded into the K weights.
    neg = jnp.float32(-1e30)
    dloc = dloc_ref[...]                                    # [TE,1], -1 = padding slot
    valid = dloc >= 0
    prod = qe_ref[...] * ke_ref[...]
    s = jnp.dot(prod, rmat_ref[...], preferred_element_type=jnp.float32)
    s = jnp.where(valid, s, neg)
    # Exact per-destination max (numerically matches PyG softmax), unrolled
    # over the small destination tile.
    m_e = jnp.zeros_like(s)
    for d in range(td):
        sel = dloc == d
        m_d = jnp.max(jnp.where(sel, s, neg), axis=0, keepdims=True)   # [1,HD]
        m_e = jnp.where(sel, m_d, m_e)
    p = jnp.exp(s - m_e)                                    # padding slots -> exp(-1e30)=0
    onehot = (dloc == jax.lax.broadcasted_iota(jnp.int32, (s.shape[0], td), 1)
              ).astype(jnp.float32)                         # [TE, TD]
    cdims = (((0,), (0,)), ((), ()))                        # contract the edge axis
    denom = jax.lax.dot_general(onehot, p, cdims,
                                preferred_element_type=jnp.float32)       # [TD,HD]
    wmsg = jax.lax.dot_general(onehot, p * ve_ref[...], cdims,
                               preferred_element_type=jnp.float32)        # [TD,HD]
    o_ref[...] = wmsg / jnp.where(denom > 0.0, denom, 1.0)  # exact division


def fused_edge_attention(q_e, k_e, v_e, dloc, r_mat, n_tiles, td):
    S, hd = q_e.shape
    te = S // n_tiles
    return pl.pallas_call(
        functools.partial(_edge_attn_kernel, td=td),
        out_shape=jax.ShapeDtypeStruct((n_tiles * td, hd), jnp.float32),
        grid=(n_tiles,),
        in_specs=[pl.BlockSpec((te, hd), lambda i: (i, 0)),
                  pl.BlockSpec((te, hd), lambda i: (i, 0)),
                  pl.BlockSpec((te, hd), lambda i: (i, 0)),
                  pl.BlockSpec((te, 1), lambda i: (i, 0)),
                  pl.BlockSpec((hd, hd), lambda i: (0, 0))],
        out_specs=pl.BlockSpec((td, hd), lambda i: (i, 0)),
        compiler_params=pltpu.CompilerParams(
            dimension_semantics=("parallel",)),
    )(q_e, k_e, v_e, dloc, r_mat)


def _gelu_linear_skip_kernel(x_ref, w_ref, b_ref, xprev_ref, skip_ref, o_ref):
    x = x_ref[...]
    g = 0.5 * x * (1.0 + jax.lax.erf(x * (1.0 / _SQRT2)))   # exact GELU (F.gelu), f32
    y = jnp.dot(g.astype(jnp.bfloat16), w_ref[...],
                preferred_element_type=jnp.float32) + b_ref[...]
    gate = jax.nn.sigmoid(jnp.full((1, 1), skip_ref[0, 0], jnp.float32))
    o_ref[...] = gate * y + (1.0 - gate) * xprev_ref[...]


def gelu_linear_skip(x, w, b, x_prev, skip):
    M, K = x.shape
    N = w.shape[1]
    tm = _row_tile(M)
    return pl.pallas_call(
        _gelu_linear_skip_kernel,
        out_shape=jax.ShapeDtypeStruct((M, N), jnp.float32),
        grid=(pl.cdiv(M, tm),),
        in_specs=[pl.BlockSpec((tm, K), lambda i: (i, 0)),
                  pl.BlockSpec((K, N), lambda i: (0, 0)),
                  pl.BlockSpec((1, N), lambda i: (0, 0)),
                  pl.BlockSpec((tm, N), lambda i: (i, 0)),
                  pl.BlockSpec(memory_space=pltpu.MemorySpace.SMEM)],
        out_specs=pl.BlockSpec((tm, N), lambda i: (i, 0)),
        compiler_params=pltpu.CompilerParams(
            dimension_semantics=("parallel",)),
    )(x, w.astype(jnp.bfloat16), b, x_prev, skip)


# ------------------------- graph preprocessing (numpy) -----------------------

def build_edge_plan(edge_index_dict, node_counts, edge_types, td=_TD):
    """One-time graph preprocessing: dst-sort each edge type and lay its edges
    into fixed-size slabs, one slab per tile of `td` destination nodes.
    Padding slots carry local-dst = -1 and are masked inside the kernel."""
    plan = {}
    for et in edge_types:
        src = np.asarray(edge_index_dict[et][0]).astype(np.int64)
        dst = np.asarray(edge_index_dict[et][1]).astype(np.int64)
        n_dst = node_counts[et[2]]
        n_tiles = max(-(-n_dst // td), 1)
        order = np.argsort(dst, kind="stable")
        tile_of = dst[order] // td
        counts = (np.bincount(tile_of, minlength=n_tiles)
                  if order.size else np.zeros((n_tiles,), np.int64))
        te = int(max(int(counts.max()) if counts.size else 0, 1))
        te = -(-te // 8) * 8
        src_pad = np.zeros((n_tiles * te,), np.int32)
        dst_pad = np.zeros((n_tiles * te,), np.int32)
        dloc = np.full((n_tiles * te, 1), -1, np.int32)
        fill = np.zeros((n_tiles,), np.int64)
        for pos in range(order.shape[0]):   # TODO(synk): vectorize for big graphs
            e = int(order[pos])
            t = int(tile_of[pos])
            slot = t * te + int(fill[t])
            src_pad[slot] = src[e]
            dst_pad[slot] = dst[e]
            dloc[slot, 0] = int(dst[e]) - t * td
            fill[t] += 1
        plan[et] = dict(src=jnp.asarray(src_pad), dst=jnp.asarray(dst_pad),
                        dloc=jnp.asarray(dloc), n_tiles=n_tiles, td=td,
                        n_dst=n_dst)
    return plan


# ------------------------------ JAX glue -------------------------------------

def _fuse_rel(w, b, rel, scale=None):
    """Fold the per-head relation matrix (and optional per-head scalar) into a
    projection weight/bias: ((x@W+b).view(H,D) @ rel) * scale[h] == x@W' + b'."""
    H, D, _ = rel.shape
    K = w.shape[0]
    if scale is not None:
        rel = rel * scale.reshape(H, 1, 1)
    w_f = jnp.einsum("khd,hde->khe", w.reshape(K, H, D), rel).reshape(K, H * D)
    b_f = jnp.einsum("bhd,hde->bhe", b.reshape(1, H, D), rel).reshape(1, H * D)
    return w_f, b_f


def hgt_conv(lp, h, edge_plan, node_types, edge_types, hidden, heads):
    D = hidden // heads

    # ---- one fused multi-output projection per node type: q plus the
    #      relation-fused (and p_rel/sqrt(D)-scaled) k'/v' per outgoing edge type.
    q_d, kv_d = {}, {}
    for nt in node_types:
        w_parts = [lp["q"][nt]["w"]]
        b_parts = [lp["q"][nt]["b"]]
        out_keys = []
        for et in edge_types:
            if et[0] != nt:
                continue
            ek = "__".join(et)
            k_scale = lp["p_rel"][ek].reshape(heads) / math.sqrt(D)
            wk, bk = _fuse_rel(lp["k"][nt]["w"], lp["k"][nt]["b"],
                               lp["a_rel"][ek], scale=k_scale)
            wv, bv = _fuse_rel(lp["v"][nt]["w"], lp["v"][nt]["b"],
                               lp["m_rel"][ek])
            w_parts += [wk, wv]
            b_parts += [bk, bv]
            out_keys.append(ek)
        w_stack = jnp.stack(w_parts, axis=0).astype(jnp.bfloat16)
        b_stack = jnp.stack(b_parts, axis=0)
        outs = fused_projection(h[nt], w_stack, b_stack)
        q_d[nt] = outs[0]
        for idx, ek in enumerate(out_keys):
            kv_d[ek] = (outs[1 + 2 * idx], outs[2 + 2 * idx])

    # ---- fused edge path per edge type: gather (XLA) then ONE Pallas kernel
    #      does score -> exact segment softmax -> message -> scatter-add.
    r_mat = jnp.kron(jnp.eye(heads, dtype=jnp.float32),
                     jnp.ones((D, D), jnp.float32))   # head reduce + broadcast
    out_d = {nt: None for nt in node_types}
    for et in edge_types:
        _, _, dst_t = et
        ek = "__".join(et)
        plan = edge_plan[et]
        k_p, v_p = kv_d[ek]
        # TODO(synk): per-edge row gathers are data-dependent; they stay as XLA
        # takes (everything downstream is fused into one Pallas kernel).
        q_e = jnp.take(q_d[dst_t], plan["dst"], axis=0)
        k_e = jnp.take(k_p, plan["src"], axis=0)
        v_e = jnp.take(v_p, plan["src"], axis=0)
        agg = fused_edge_attention(q_e, k_e, v_e, plan["dloc"], r_mat,
                                   plan["n_tiles"], plan["td"])[:plan["n_dst"]]
        out_d[dst_t] = agg if out_d[dst_t] is None else out_d[dst_t] + agg  # group='sum'

    new_h = {}
    for nt in node_types:
        agg = out_d[nt]
        if agg is None:
            # node type with no incoming edges: message is zero, skip path dominates.
            agg = jnp.zeros_like(h[nt])
        new_h[nt] = gelu_linear_skip(agg, lp["a"][nt]["w"], lp["a"][nt]["b"],
                                     h[nt], lp["skip"][nt])
    return new_h


def hgt_forward(params, x_dict, edge_plan, node_types, edge_types, hidden, heads):
    # lin_dict[node_type](x).relu_()
    h = {nt: linear(x_dict[nt], params["in"][nt]["w"], params["in"][nt]["b"],
                    act="relu")
         for nt in node_types}
    for lp in params["convs"]:
        h = hgt_conv(lp, h, edge_plan, node_types, edge_types, hidden, heads)
    # unsqueeze(0) (both `lp` branches of the torch module are identical)
    return {nt: h[nt][None] for nt in node_types}


# ---------------------------- parameter init ---------------------------------

def _glorot(key, shape):
    fan_in, fan_out = shape[-2], shape[-1]
    lim = math.sqrt(6.0 / (fan_in + fan_out))
    return jax.random.uniform(key, shape, jnp.float32, -lim, lim)


def init_params(key, node_feat_dims, node_types, edge_types, hidden, heads,
                num_layers):
    D = hidden // heads
    state = {"key": key}

    def nxt():
        state["key"], sub = jax.random.split(state["key"])
        return sub

    params = {"in": {}, "convs": []}
    for nt in node_types:
        params["in"][nt] = {"w": _glorot(nxt(), (node_feat_dims[nt], hidden)),
                            "b": jnp.zeros((1, hidden), jnp.float32)}
    for _ in range(num_layers):
        lp = {"k": {}, "q": {}, "v": {}, "a": {}, "skip": {},
              "a_rel": {}, "m_rel": {}, "p_rel": {}}
        for nt in node_types:
            for name in ("k", "q", "v", "a"):
                lp[name][nt] = {"w": _glorot(nxt(), (hidden, hidden)),
                                "b": jnp.zeros((1, hidden), jnp.float32)}
            lp["skip"][nt] = jnp.ones((1, 1), jnp.float32)       # skip init = 1
        for et in edge_types:
            ek = "__".join(et)
            lp["a_rel"][ek] = _glorot(nxt(), (heads, D, D))
            lp["m_rel"][ek] = _glorot(nxt(), (heads, D, D))
            lp["p_rel"][ek] = jnp.ones((1, heads), jnp.float32)  # p_rel init = 1
        params["convs"].append(lp)
    return params


# --------------------------------- main ---------------------------------------

if __name__ == "__main__":
    hidden_channels, num_heads, num_layers = 32, 2, 2
    node_types = ("author", "paper")
    node_counts = {"author": 8, "paper": 16}
    node_feat_dims = {"author": 12, "paper": 24}
    edge_types = (("author", "writes", "paper"),
                  ("paper", "written_by", "author"),
                  ("paper", "cites", "paper"))
    edge_counts = {edge_types[0]: 32, edge_types[1]: 32, edge_types[2]: 24}

    key = jax.random.PRNGKey(0)
    key, ka, kp_ = jax.random.split(key, 3)
    x_dict = {
        "author": jax.random.normal(ka, (node_counts["author"],
                                         node_feat_dims["author"]), jnp.float32),
        "paper": jax.random.normal(kp_, (node_counts["paper"],
                                         node_feat_dims["paper"]), jnp.float32),
    }
    edge_index_dict = {}
    for et in edge_types:
        key, ks, kd = jax.random.split(key, 3)
        E = edge_counts[et]
        src = jax.random.randint(ks, (E,), 0, node_counts[et[0]], dtype=jnp.int32)
        dst = jax.random.randint(kd, (E,), 0, node_counts[et[2]], dtype=jnp.int32)
        edge_index_dict[et] = jnp.stack([src, dst], axis=0)

    key, kparams = jax.random.split(key)
    params = init_params(kparams, node_feat_dims, node_types, edge_types,
                         hidden_channels, num_heads, num_layers)

    edge_plan = build_edge_plan(edge_index_dict, node_counts, edge_types)

    out = hgt_forward(params, x_dict, edge_plan, node_types, edge_types,
                      hidden_channels, num_heads)
    out = jax.block_until_ready(out)

    assert out["author"].shape == (1, node_counts["author"], hidden_channels)
    assert out["paper"].shape == (1, node_counts["paper"], hidden_channels)
    assert all(bool(jnp.all(jnp.isfinite(v))) for v in out.values())
    print("KERNEL_OK")
</pallas_src>

<mosaic_0001>
module attributes {stable_mosaic.version = 11 : i64} {
  func.func @_linear_kernel(%arg0: i32, %arg1: memref<8x12xf32, #tpu.memory_space<vmem>>, %arg2: memref<12x32xbf16, #tpu.memory_space<vmem>>, %arg3: memref<1x32xf32, #tpu.memory_space<vmem>>, %arg4: memref<8x32xf32, #tpu.memory_space<vmem>>) attributes {dimension_semantics = [#tpu.dimension_semantics<parallel>], iteration_bounds = array<i64: 1>, scalar_prefetch = 0 : i64, scratch_operands = 0 : i64, tpu.core_type = #tpu.core_type<tc>, window_params = [{transform_indices = @transform_0, window_bounds = array<i64: 8, 12>}, {pipeline_mode = #tpu.pipeline_mode<synchronous>, transform_indices = @transform_1, window_bounds = array<i64: 12, 32>}, {pipeline_mode = #tpu.pipeline_mode<synchronous>, transform_indices = @transform_2, window_bounds = array<i64: 1, 32>}, {transform_indices = @transform_3, window_bounds = array<i64: 8, 32>}]} {
    %c0 = arith.constant 0 : index
    %c0_0 = arith.constant 0 : index
    %0 = vector.load %arg1[%c0, %c0_0] : memref<8x12xf32, #tpu.memory_space<vmem>>, vector<8x12xf32>
    %1 = arith.truncf %0 : vector<8x12xf32> to vector<8x12xbf16>
    %c0_1 = arith.constant 0 : index
    %c0_2 = arith.constant 0 : index
    %2 = vector.load %arg2[%c0_1, %c0_2] : memref<12x32xbf16, #tpu.memory_space<vmem>>, vector<12x32xbf16>
    %cst = arith.constant dense<0.000000e+00> : vector<8x32xf32>
    %3 = tpu.matmul %1, %2, %cst {dimension_numbers = #tpu.dot_dimension_numbers<[1], [0], [0], [1], [0, 0, 1, 1], [], []>} : vector<8x12xbf16>, vector<12x32xbf16>, vector<8x32xf32> -> vector<8x32xf32>
    %c0_3 = arith.constant 0 : index
    %c0_4 = arith.constant 0 : index
    %4 = vector.load %arg3[%c0_3, %c0_4] : memref<1x32xf32, #tpu.memory_space<vmem>>, vector<1x32xf32>
    %5 = vector.broadcast %4 : vector<1x32xf32> to vector<8x32xf32>
    %6 = arith.addf %3, %5 : vector<8x32xf32>
    %cst_5 = arith.constant 0.000000e+00 : f32
    %7 = vector.broadcast %cst_5 : f32 to vector<8x32xf32>
    %8 = arith.maximumf %6, %7 : vector<8x32xf32>
    %c0_6 = arith.constant 0 : index
    %c0_7 = arith.constant 0 : index
    %9 = vector.load %arg4[%c0_6, %c0_7] : memref<8x32xf32, #tpu.memory_space<vmem>>, vector<8x32xf32>
    tpu.vector_store %arg4[%c0_6, %c0_7], %8 {strides = array<i32>} : memref<8x32xf32, #tpu.memory_space<vmem>>, vector<8x32xf32>,
    return
  }
  func.func @transform_0(%arg0: i32) -> (i32, i32) {
    %c0_i32 = arith.constant 0 : i32
    %c0_i32_0 = arith.constant 0 : i32
    return %arg0, %c0_i32 : i32, i32
  }
  func.func @transform_1(%arg0: i32) -> (i32, i32) {
    %c0_i32 = arith.constant 0 : i32
    %c0_i32_0 = arith.constant 0 : i32
    %c0_i32_1 = arith.constant 0 : i32
    return %c0_i32, %c0_i32_0 : i32, i32
  }
  func.func @transform_2(%arg0: i32) -> (i32, i32) {
    %c0_i32 = arith.constant 0 : i32
    %c0_i32_0 = arith.constant 0 : i32
    %c0_i32_1 = arith.constant 0 : i32
    return %c0_i32, %c0_i32_0 : i32, i32
  }
  func.func @transform_3(%arg0: i32) -> (i32, i32) {
    %c0_i32 = arith.constant 0 : i32
    %c0_i32_0 = arith.constant 0 : i32
    return %arg0, %c0_i32 : i32, i32
  }
}

</mosaic_0001>

<llo_original>
// kernel: tpu_custom_call.1
$region0: #{tpu_custom_call.1}
  #allocation0 [shape = 'u32[]', space=smem, size = 0x4, offset = 0x4, fixed_abs, tag = 'smem constant byte address 0x4 - core index']
  #allocation1 [shape = 'u32[72,128]{1,0:T(1,128)}', space=vmem, size = 0x9000, scoped, tag = 'internal scratch']
  %s0 = inlined_call_operand.hbm [shape: f32[8,12], index: 0, kind: input, shape index: {}]
  %s1 = inlined_call_operand.hbm [shape: bf16[12,32], index: 1, kind: input, shape index: {}]
  %s2 = inlined_call_operand.vmem [shape: f32[1,32], index: 2, kind: input, shape index: {}]
  %s3 = inlined_call_operand.hbm [shape: f32[8,32], index: 3, kind: output, shape index: {}]
  %s4 = sld [smem:[#allocation0]]
  $region30: #{tpu_custom_call.1} parent=0
    _
  %s6 = ssub.s32 1, %s4
  %s7 = scalar_select 0, %s6, %s4
  $region1: #{tpu_custom_call.1} parent=0
    #allocation2 [shape = 'u8[4096]{0}', space=vmem, size = 0x1000, scoped, tag = 'input window, operand 0, single buffered']
    #allocation3 [shape = 's32[1]{0}', space=sflag, size = 0x4, scoped, tag = 'scoped memory for tpu_custom_call.1']
    #allocation4 [shape = 's32[1]{0}', space=sflag, size = 0x4, scoped, tag = 'scoped memory for tpu_custom_call.1']
    #allocation5 [shape = 'u8[4096]{0}', space=vmem, size = 0x1000, scoped, tag = 'input window, operand 1, single buffered']
    #allocation6 [shape = 's32[1]{0}', space=sflag, size = 0x4, scoped, tag = 'scoped memory for tpu_custom_call.1']
    #allocation7 [shape = 'u8[4096]{0}', space=vmem, size = 0x1000, scoped, tag = 'output window, operand 0, single buffered']
    %8 = vsyncpa [#allocation3], 0
    %9 = vsyncpa [#allocation6], 0
    %10 = vsyncpa [#allocation4], 0
    // Predicated region
    $region2: #{tpu_custom_call.1} parent=1 // pred_check
      _
    $region3: #{tpu_custom_call.1} parent=1 // pred_check_branch
      %12 = sbr.rel (0) target = $region5
    $region4: #{tpu_custom_call.1} parent=1 // pred_region
      %14 = vsyncadd [#allocation3], 0
      %s16 = sshll.u32 %s0, 4
      %s17 = int_to_ptr.hbm [resolvable:$true] %s16
      %s18 = sshll.u32 [#allocation2], 4
      %s19 = int_to_ptr.vmem [resolvable:$true] %s18
      %21 = dma.hbm_to_vmem [thread:$0]  %s17, 128, %s19, [#allocation3]
    $region5: #{tpu_custom_call.1} parent=1 // pred_fallthru
      _
    // Predicated region
    $region6: #{tpu_custom_call.1} parent=1 // pred_check
      _
    $region7: #{tpu_custom_call.1} parent=1 // pred_check_branch
      %23 = sbr.rel (0) target = $region9
    $region8: #{tpu_custom_call.1} parent=1 // pred_region
      %25 = vsyncadd [#allocation6], 0
      %s26 = sshll.u32 %s1, 4
      %s27 = int_to_ptr.hbm [resolvable:$true] %s26
      %s28 = sshll.u32 [#allocation5], 4
      %s29 = int_to_ptr.vmem [resolvable:$true] %s28
      %34 = dma.hbm_to_vmem [thread:$0]  %s27, 128, %s29, [#allocation6], 64, 64, 4
    $region9: #{tpu_custom_call.1} parent=1 // pred_fallthru
      _
    // Predicated region
    $region10: #{tpu_custom_call.1} parent=1 // pred_check
      _
    $region11: #{tpu_custom_call.1} parent=1 // pred_check_branch
      %36 = sbr.rel (0) target = $region13
    $region12: #{tpu_custom_call.1} parent=1 // pred_region
      _
    $region13: #{tpu_custom_call.1} parent=1 // pred_fallthru
      _
    // Predicated region
    $region14: #{tpu_custom_call.1} parent=1 // pred_check
      _
    $region15: #{tpu_custom_call.1} parent=1 // pred_check_branch
      %38 = sbr.rel (0) target = $region17
    $region16: #{tpu_custom_call.1} parent=1 // pred_region
      %40 = dma.done [#allocation3], 128
    $region17: #{tpu_custom_call.1} parent=1 // pred_fallthru
      _
    // Predicated region
    $region18: #{tpu_custom_call.1} parent=1 // pred_check
      _
    $region19: #{tpu_custom_call.1} parent=1 // pred_check_branch
      %42 = sbr.rel (0) target = $region21
    $region20: #{tpu_custom_call.1} parent=1 // pred_region
      %44 = dma.done [#allocation6], 128
    $region21: #{tpu_custom_call.1} parent=1 // pred_fallthru
      _
    %v46 = vld [vmem:[#allocation2] sm:$0xff]
    %v47 = vpack.c.bf16 %v46, %v46
    %v48 = vld [vmem:[#allocation5] sm:$0xf]
    %v49 = vld [vmem:[#allocation5 + $0x4] sm:$0x3]
    %v50 = vld [vmem:[%s2] sm:$0x1]
    %v52 = vperm.slane %v50, 0
    %v56 = vunpack.c.l.b16 %v48
    %v57 = vunpack.c.l.b16 %v49
    %v58 = vpack.c.b16 %v57, %v56
    %vm59 = vcmask 97280
    %v61 = vsel %vm59, %v47, 0
    %vm63 = vcmask 1045504
    %v65 = vsel %vm63, %v58, 0
    %67 = vmatpush.bf16.msra.mxu0 0
    %68 = vmatpush.bf16.msra.mxu0 0
    %69 = vmatpush.bf16.msra.mxu0 0
    %70 = vmatpush.bf16.msra.mxu0 0
    %71 = vmatpush.bf16.msra.mxu0 0
    %72 = vmatpush.bf16.msra.mxu0 0
    %73 = vmatpush.bf16.msra.mxu0 0
    %74 = vmatpush.bf16.msra.mxu0 %v65
    %75 = vmatmul.bf16.gmra.mxu0 %v61
    %v76 = vpop.f32.mrf.mxu0
    %v77 = vadd.f32 %v52, %v76
    %v78 = vpop.f32.mrf.mxu0
    %79 = vdwg.mxu0
    %v80 = vmax.f32 %v77, 0.0
    %vm81 = vcmask 261120
    %82 = vst.msk [vmem:[#allocation7] sm:$0xff] %vm81, %v80
    // Predicated region
    $region22: #{tpu_custom_call.1} parent=1 // pred_check
      _
    $region23: #{tpu_custom_call.1} parent=1 // pred_check_branch
      %84 = sbr.rel (0) target = $region25
    $region24: #{tpu_custom_call.1} parent=1 // pred_region
      %86 = vsyncadd [#allocation4], 0
      %s88 = sshll.u32 [#allocation7], 4
      %s89 = int_to_ptr.vmem [resolvable:$true] %s88
      %s90 = sshll.u32 %s3, 4
      %s91 = int_to_ptr.hbm [resolvable:$true] %s90
      %93 = dma.vmem_to_hbm [thread:$0]  %s89, 128, %s91, [#allocation4]
    $region25: #{tpu_custom_call.1} parent=1 // pred_fallthru
      _
    // Predicated region
    $region26: #{tpu_custom_call.1} parent=1 // pred_check
      _
    $region27: #{tpu_custom_call.1} parent=1 // pred_check_branch
      %95 = sbr.rel (0) target = $region29
    $region28: #{tpu_custom_call.1} parent=1 // pred_region
      %97 = dma.done [#allocation4], 128
    $region29: #{tpu_custom_call.1} parent=1 // pred_fallthru
      _
    %98 = vsyncpa [#allocation3], 1
    %99 = vsyncpa [#allocation6], 1
    %100 = vsyncpa [#allocation4], 1

</llo_original>
